<compile_context>
chip_gen: v6e
topology: v6e:2x2x1
jax: 0.10.0
libtpu: 0.0.40
codegen_flags: <defaults>
</compile_context>

<pallas_src>
import functools

import jax
import jax.numpy as jnp
from jax import lax
from jax.experimental import pallas as pl
from jax.experimental.pallas import tpu as pltpu

_LANE = 128        # lane tile
_SUB = 8           # sublane tile
_MAX_BLOCK_ROWS = 4096   # 4096*128*4B = 2 MiB / input block (8 MiB double-buffered)
_CHUNK_ROWS = 128        # rows folded into the accumulator per inner step


def _bce(x, t):
    """Stable elementwise BCE-with-logits (== t*-log(sigmoid(x)) + (1-t)*-log(1-sigmoid(x)))."""
    return jnp.maximum(x, 0.0) - x * t + jnp.log1p(jnp.exp(-jnp.abs(x)))


def _bce_sum_kernel(x_ref, t_ref, acc_ref, *, block_rows, inner, n_blocks,
                    last_rows, has_phantom):
    """Accumulate per-lane partial sums of the BCE loss into acc_ref (8,128)."""
    c = pl.program_id(0)          # partial ("parallel") axis
    i = pl.program_id(1)          # reduction ("arbitrary") axis
    blk = c * inner + i           # logical block index (may exceed n_blocks-1)

    @pl.when(i == 0)
    def _init():
        acc_ref[...] = jnp.zeros_like(acc_ref)

    def fold(row0, nrows, valid_rows):
        # Load an (nrows, 128) chunk, compute the loss, fold into the (8,128)
        # accumulator with pure vector adds.  valid_rows=None -> unmasked.
        x = x_ref[pl.ds(row0, nrows), :].astype(jnp.float32)
        t = t_ref[pl.ds(row0, nrows), :].astype(jnp.float32)
        if valid_rows is not None:
            rid = row0 + lax.broadcasted_iota(jnp.int32, (nrows, _LANE), 0)
            ok = rid < valid_rows
            # sanitize garbage from the out-of-bounds rows before the math,
            # zero the loss after it.
            x = jnp.where(ok, x, 0.0)
            t = jnp.where(ok, t, 0.0)
            loss = jnp.where(ok, _bce(x, t), 0.0)
        else:
            loss = _bce(x, t)
        full8 = (nrows // _SUB) * _SUB
        if full8:
            acc_ref[...] += loss[:full8].reshape(full8 // _SUB, _SUB, _LANE).sum(axis=0)
        rem = nrows - full8
        if rem:  # only possible for a tiny single-block array
            acc_ref[:rem, :] += loss[full8:, :]

    def accumulate(valid_rows):
        n_chunks = block_rows // _CHUNK_ROWS
        rem_rows = block_rows - n_chunks * _CHUNK_ROWS
        if n_chunks == 1:
            fold(0, _CHUNK_ROWS, valid_rows)
        elif n_chunks > 1:
            def body(j, carry):
                fold(pl.multiple_of(j * _CHUNK_ROWS, _CHUNK_ROWS),
                     _CHUNK_ROWS, valid_rows)
                return carry
            lax.fori_loop(0, n_chunks, body, 0, unroll=False)
        if rem_rows:
            fold(n_chunks * _CHUNK_ROWS, rem_rows, valid_rows)

    mask_last = last_rows != block_rows    # trace-time: last block overhangs?

    if mask_last or has_phantom:
        fast_hi = (n_blocks - 1) if mask_last else n_blocks

        @pl.when(blk < fast_hi)
        def _fast():
            accumulate(None)               # hot path: no mask work at all

        if mask_last:
            @pl.when(blk == n_blocks - 1)
            def _tail():
                accumulate(last_rows)      # row-mask paid on one block only
        # phantom blocks (blk >= n_blocks) fall through: no accumulation
    else:
        accumulate(None)


@jax.jit
def nll_loss(outputs, targets):
    """Pallas TPU implementation of NLLLoss.forward (scalar f32 result)."""
    assert outputs.shape == targets.shape
    n = outputs.size
    x = outputs.reshape(-1)
    t = targets.reshape(-1)

    rows = n // _LANE              # fully populated 128-lane rows
    n_main = rows * _LANE
    tail = n - n_main              # < 128 leftover elements

    total = jnp.float32(0.0)
    if tail:
        # Tiny lane tail folded in the wrapper with plain jnp (no jnp.pad of
        # the full operands, no per-block element mask in the kernel).
        xt = x[n_main:].astype(jnp.float32)
        tt = t[n_main:].astype(jnp.float32)
        total = total + jnp.sum(_bce(xt, tt))

    if rows > 0:
        if tail:
            x = x[:n_main]
            t = t[:n_main]
        x2 = x.reshape(rows, _LANE)    # free reshape whenever n % 128 == 0
        t2 = t.reshape(rows, _LANE)

        block_rows = rows if rows <= _MAX_BLOCK_ROWS else _MAX_BLOCK_ROWS
        n_blocks = pl.cdiv(rows, block_rows)
        last_rows = rows - (n_blocks - 1) * block_rows   # valid rows in last block

        # Unconditional 2-way partial split whenever there is more than one
        # block; an odd block count gets a phantom block (clamped index_map,
        # skipped in-kernel) instead of falling back to a single partial.
        num_partials = 2 if n_blocks >= 2 else 1
        inner = pl.cdiv(n_blocks, num_partials)
        has_phantom = num_partials * inner != n_blocks

        kernel = functools.partial(
            _bce_sum_kernel,
            block_rows=block_rows, inner=inner, n_blocks=n_blocks,
            last_rows=last_rows, has_phantom=has_phantom)

        def in_idx(c, i):
            # Clamp phantom blocks onto the last real block: the pipeline then
            # re-uses the already-resident tile and the kernel skips its math.
            return (jnp.minimum(c * inner + i, n_blocks - 1), 0)

        in_spec = pl.BlockSpec((block_rows, _LANE), in_idx)

        partials = pl.pallas_call(
            kernel,
            out_shape=jax.ShapeDtypeStruct((num_partials, _SUB, _LANE),
                                           jnp.float32),
            grid=(num_partials, inner),
            in_specs=[in_spec, in_spec],
            # One resident (8,128) accumulator block per partial.
            out_specs=pl.BlockSpec((None, _SUB, _LANE), lambda c, i: (c, 0, 0)),
            # NOTE(v7x): use pltpu.CORE_PARALLEL on the leading axis (and raise
            # _MAX_BLOCK_ROWS to 8192) to guarantee the two partials shard
            # across both TensorCores; "parallel" keeps this runnable on 1-TC
            # v5e/v6e.
            compiler_params=pltpu.CompilerParams(
                dimension_semantics=("parallel", "arbitrary")),
        )(x2, t2)
        total = total + jnp.sum(partials)

    return (total / jnp.float32(n)).astype(jnp.float32)


def _reference(outputs, targets):
    x = outputs.astype(jnp.float32)
    t = targets.astype(jnp.float32)
    p = jax.nn.sigmoid(x)
    return jnp.mean(t * -jnp.log(p) + (1.0 - t) * -jnp.log(1.0 - p))


if __name__ == "__main__":
    key = jax.random.PRNGKey(0)

    # (shape, dtype) cases exercising every path:
    #   aligned fast path / lane-tail + tiny block / multi-block with phantom
    #   block + masked last block + lane tail / bf16 inputs (half HBM traffic).
    cases = [
        ((2, 4, 16, 16), jnp.float32),
        ((3, 5, 7, 11), jnp.float32),
        ((1021, 1031), jnp.float32),
        ((2, 4, 16, 16), jnp.bfloat16),
    ]

    ok = True
    for shape, dtype in cases:
        key, k1, k2 = jax.random.split(key, 3)
        outputs = jax.random.normal(k1, shape, dtype=jnp.float32).astype(dtype)
        targets = jax.random.bernoulli(k2, p=0.5, shape=shape).astype(dtype)

        loss = jax.block_until_ready(nll_loss(outputs, targets))
        ref = _reference(outputs, targets)
        if not jnp.allclose(loss, ref, rtol=2e-4, atol=1e-5):
            ok = False
            print("MISMATCH", shape, dtype, float(loss), float(ref))

    if ok:
        print("KERNEL_OK")
</pallas_src>

<mosaic_0001>
module attributes {stable_mosaic.version = 11 : i64} {
  func.func @_bce_sum_kernel(%arg0: i32, %arg1: i32, %arg2: memref<16x128xf32, #tpu.memory_space<vmem>>, %arg3: memref<16x128xf32, #tpu.memory_space<vmem>>, %arg4: memref<1x8x128xf32, #tpu.memory_space<vmem>>) attributes {dimension_semantics = [#tpu.dimension_semantics<parallel>, #tpu.dimension_semantics<arbitrary>], iteration_bounds = array<i64: 1, 1>, scalar_prefetch = 0 : i64, scratch_operands = 0 : i64, tpu.core_type = #tpu.core_type<tc>, window_params = [{transform_indices = @transform_0, window_bounds = array<i64: 16, 128>}, {transform_indices = @transform_1, window_bounds = array<i64: 16, 128>}, {transform_indices = @transform_2, window_bounds = array<i64: 1, 8, 128>}]} {
    %c0_i32 = arith.constant 0 : i32
    %0 = arith.cmpi eq, %arg1, %c0_i32 : i32
    %1 = arith.extui %0 : i1 to i32
    %c0_i32_0 = arith.constant 0 : i32
    %2 = arith.cmpi ne, %1, %c0_i32_0 : i32
    scf.if %2 {
      %cst_12 = arith.constant 0.000000e+00 : f32
      %23 = vector.broadcast %cst_12 : f32 to vector<8x128xf32>
      %c0_13 = arith.constant 0 : index
      %c0_14 = arith.constant 0 : index
      %c0_15 = arith.constant 0 : index
      %24 = vector.load %arg4[%c0_13, %c0_14, %c0_15] : memref<1x8x128xf32, #tpu.memory_space<vmem>>, vector<1x8x128xf32>
      %25 = vector.shape_cast %24 : vector<1x8x128xf32> to vector<8x128xf32>
      %26 = vector.shape_cast %23 : vector<8x128xf32> to vector<1x8x128xf32>
      tpu.vector_store %arg4[%c0_13, %c0_14, %c0_15], %26 {strides = array<i32>} : memref<1x8x128xf32, #tpu.memory_space<vmem>>, vector<1x8x128xf32>,
    } else {
    }
    %c0 = arith.constant 0 : index
    %c0_1 = arith.constant 0 : index
    %3 = vector.load %arg2[%c0, %c0_1] : memref<16x128xf32, #tpu.memory_space<vmem>>, vector<16x128xf32>
    %c0_2 = arith.constant 0 : index
    %c0_3 = arith.constant 0 : index
    %4 = vector.load %arg3[%c0_2, %c0_3] : memref<16x128xf32, #tpu.memory_space<vmem>>, vector<16x128xf32>
    %cst = arith.constant 0.000000e+00 : f32
    %5 = vector.broadcast %cst : f32 to vector<16x128xf32>
    %6 = arith.maximumf %3, %5 : vector<16x128xf32>
    %7 = arith.mulf %3, %4 : vector<16x128xf32>
    %8 = arith.subf %6, %7 : vector<16x128xf32>
    %9 = math.absf %3 : vector<16x128xf32>
    %cst_4 = arith.constant 0.000000e+00 : f32
    %10 = vector.broadcast %cst_4 : f32 to vector<16x128xf32>
    %11 = arith.subf %10, %9 : vector<16x128xf32>
    %12 = math.exp %11 : vector<16x128xf32>
    %13 = math.log1p %12 : vector<16x128xf32>
    %14 = arith.addf %8, %13 : vector<16x128xf32>
    %c0_5 = arith.constant 0 : index
    %c0_6 = arith.constant 0 : index
    %c0_7 = arith.constant 0 : index
    %15 = vector.load %arg4[%c0_5, %c0_6, %c0_7] : memref<1x8x128xf32, #tpu.memory_space<vmem>>, vector<1x8x128xf32>
    %16 = vector.shape_cast %15 : vector<1x8x128xf32> to vector<8x128xf32>
    %17 = vector.shape_cast %14 : vector<16x128xf32> to vector<2x8x128xf32>
    %cst_8 = arith.constant dense<0.000000e+00> : vector<8x128xf32>
    %18 = vector.multi_reduction <add>, %17, %cst_8 [0] : vector<2x8x128xf32> to vector<8x128xf32>
    %19 = arith.addf %16, %18 : vector<8x128xf32>
    %c0_9 = arith.constant 0 : index
    %c0_10 = arith.constant 0 : index
    %c0_11 = arith.constant 0 : index
    %20 = vector.load %arg4[%c0_9, %c0_10, %c0_11] : memref<1x8x128xf32, #tpu.memory_space<vmem>>, vector<1x8x128xf32>
    %21 = vector.shape_cast %20 : vector<1x8x128xf32> to vector<8x128xf32>
    %22 = vector.shape_cast %19 : vector<8x128xf32> to vector<1x8x128xf32>
    tpu.vector_store %arg4[%c0_9, %c0_10, %c0_11], %22 {strides = array<i32>} : memref<1x8x128xf32, #tpu.memory_space<vmem>>, vector<1x8x128xf32>,
    return
  }
  func.func @transform_0(%arg0: i32, %arg1: i32) -> (i32, i32) {
    %c1_i32 = arith.constant 1 : i32
    %0 = arith.muli %arg0, %c1_i32 : i32
    %1 = arith.addi %0, %arg1 : i32
    %c0_i32 = arith.constant 0 : i32
    %2 = arith.minsi %1, %c0_i32 : i32
    %c0_i32_0 = arith.constant 0 : i32
    %c0_i32_1 = arith.constant 0 : i32
    return %2, %c0_i32_0 : i32, i32
  }
  func.func @transform_1(%arg0: i32, %arg1: i32) -> (i32, i32) {
    %c1_i32 = arith.constant 1 : i32
    %0 = arith.muli %arg0, %c1_i32 : i32
    %1 = arith.addi %0, %arg1 : i32
    %c0_i32 = arith.constant 0 : i32
    %2 = arith.minsi %1, %c0_i32 : i32
    %c0_i32_0 = arith.constant 0 : i32
    %c0_i32_1 = arith.constant 0 : i32
    return %2, %c0_i32_0 : i32, i32
  }
  func.func @transform_2(%arg0: i32, %arg1: i32) -> (i32, i32, i32) {
    %c0_i32 = arith.constant 0 : i32
    %c0_i32_0 = arith.constant 0 : i32
    %c0_i32_1 = arith.constant 0 : i32
    return %arg0, %c0_i32, %c0_i32_0 : i32, i32, i32
  }
}

</mosaic_0001>

<llo_original>
// kernel: nll_loss.1
$region0: #{nll_loss.1}
  #allocation0 [shape = 'u32[]', space=smem, size = 0x4, offset = 0x4, fixed_abs, tag = 'smem constant byte address 0x4 - core index']
  #allocation1 [shape = 'u32[144,128]{1,0:T(1,128)}', space=vmem, size = 0x12000, scoped, tag = 'internal scratch']
  %s0 = inlined_call_operand.vmem [shape: f32[16,128], index: 0, kind: input, shape index: {}]
  %s1 = inlined_call_operand.vmem [shape: f32[16,128], index: 1, kind: input, shape index: {}]
  %s2 = inlined_call_operand.vmem [shape: f32[1,8,128], index: 2, kind: output, shape index: {}]
  %s3 = sld [smem:[#allocation0]]
  $region22: #{nll_loss.1} parent=0
    _
  %s5 = ssub.s32 1, %s3
  %s6 = scalar_select 0, %s5, %s3
  // Predicated region
  $region2: #{nll_loss.1} parent=0 // pred_check
    _
  $region3: #{nll_loss.1} parent=0 // pred_check_branch
    %8 = sbr.rel (0) target = $region5
  $region4: #{nll_loss.1} parent=0 // pred_region
    %s9 = sadd.s32 0, 0
    %p10 = scmp.lt.s32.totalorder %s9, 0
    %s11 = scalar_select %p10, %s9, 0
    %s12 = smul.u32 2, %s11
    %p13 = scmp.lt.s32.totalorder %s12, 1
    %s14 = scalar_select %p13, %s12, 1
    %s15 = smul.addr %s14, 8
    %s16 = scalar_lea.vmem %s0, %s15
    %s17 = sadd.s32 0, 0
    %p18 = scmp.lt.s32.totalorder %s17, 0
    %s19 = scalar_select %p18, %s17, 0
    %s20 = smul.u32 2, %s19
  $region5: #{nll_loss.1} parent=0 // pred_fallthru
    _
  // Predicated region
  $region6: #{nll_loss.1} parent=0 // pred_check
    _
  $region7: #{nll_loss.1} parent=0 // pred_check_branch
    %22 = sbr.rel (0) target = $region9
  $region8: #{nll_loss.1} parent=0 // pred_region
    %s23 = sadd.s32 0, 0
    %p24 = scmp.lt.s32.totalorder %s23, 0
    %s25 = scalar_select %p24, %s23, 0
    %s26 = smul.u32 2, %s25
    %p27 = scmp.lt.s32.totalorder %s26, 1
    %s28 = scalar_select %p27, %s26, 1
    %s29 = smul.addr %s28, 8
    %s30 = scalar_lea.vmem %s1, %s29
    %s31 = sadd.s32 0, 0
    %p32 = scmp.lt.s32.totalorder %s31, 0
    %s33 = scalar_select %p32, %s31, 0
    %s34 = smul.u32 2, %s33
  $region9: #{nll_loss.1} parent=0 // pred_fallthru
    _
  %s35 = sadd.s32 0, 0
  %p36 = scmp.lt.s32.totalorder %s35, 0
  %s37 = scalar_select %p36, %s35, 0
  %s38 = smul.u32 2, %s37
  %p39 = scmp.lt.s32.totalorder %s38, 1
  %s40 = scalar_select %p39, %s38, 1
  %s41 = smul.addr %s40, 8
  %s42 = scalar_lea.vmem %s0, %s41
  %s43 = sadd.s32 0, 0
  %p44 = scmp.lt.s32.totalorder %s43, 0
  %s45 = scalar_select %p44, %s43, 0
  %s46 = smul.u32 2, %s45
  %p47 = scmp.lt.s32.totalorder %s46, 1
  %s48 = scalar_select %p47, %s46, 1
  %s49 = smul.addr %s48, 8
  %s50 = scalar_lea.vmem %s1, %s49
  %s51 = sadd.s32 0, 0
  %p52 = scmp.lt.s32.totalorder %s51, 0
  %s53 = scalar_select %p52, %s51, 0
  %s54 = smul.u32 2, %s53
  %p55 = scmp.lt.s32.totalorder %s54, 1
  %s56 = scalar_select %p55, %s54, 1
  %s57 = smul.addr %s56, 8
  %s58 = scalar_lea.vmem %s0, %s57
  %s59 = sadd.s32 0, 0
  %p60 = scmp.lt.s32.totalorder %s59, 0
  %s61 = scalar_select %p60, %s59, 0
  %s62 = smul.u32 2, %s61
  %s63 = sadd.s32 0, 0
  %p64 = scmp.lt.s32.totalorder %s63, 0
  %s65 = scalar_select %p64, %s63, 0
  %s66 = smul.u32 2, %s65
  %p67 = scmp.lt.s32.totalorder %s66, 1
  %s68 = scalar_select %p67, %s66, 1
  %s69 = smul.addr %s68, 8
  %s70 = scalar_lea.vmem %s1, %s69
  %s71 = sadd.s32 0, 0
  %p72 = scmp.lt.s32.totalorder %s71, 0
  %s73 = scalar_select %p72, %s71, 0
  %s74 = smul.u32 2, %s73
  %p75 = scmp.eq.s32.totalorder 0, 0
  // Predicated region
  $region10: #{nll_loss.1} parent=0 // pred_check
    %p76 = pneg %p75
  $region11: #{nll_loss.1} parent=0 // pred_check_branch
    %78 = sbr.rel (%p76) target = $region13
  $region12: #{nll_loss.1} parent=0 // pred_region
    %79 = vst [vmem:[%s2] sm:$0xff] 0.0
  $region13: #{nll_loss.1} parent=0 // pred_fallthru
    _
  %v80 = vld [vmem:[%s58] sm:$0xff]
  %v81 = vld [vmem:[%s58 + $0x8] sm:$0xff]
  %v82 = vld [vmem:[%s70] sm:$0xff]
  %v83 = vld [vmem:[%s70 + $0x8] sm:$0xff]
  %v84 = vmax.f32 %v80, 0.0
  %v85 = vmax.f32 %v81, 0.0
  %v86 = vmul.f32 %v80, %v82
  %v87 = vmul.f32 %v81, %v83
  %v88 = vsub.f32 %v84, %v86
  %v89 = vsub.f32 %v85, %v87
  %v90 = vand.u32 2147483647, %v80
  %v91 = vand.u32 2147483647, %v81
  %v92 = vsub.f32 0.0, %v90
  %v93 = vsub.f32 0.0, %v91
  %v94 = vmul.f32 %v92, 1.442695
  %v95 = vpow.pop %v94
  %v96 = vmul.f32 %v93, 1.442695
  %v97 = vpow.pop %v96
  %v98 = vadd.f32 %v95, 1.0
  %v99 = vlog2.pop %v98
  %v100 = vmul.f32 %v99, 0.6931472
  %v101 = vmul.f32 -0.5, %v95
  %v102 = vadd.f32 %v101, 1.0
  %v103 = vmul.f32 %v102, %v95
  %v104 = vand.u32 2147483647, %v95
  %vm105 = vcmp.lt.f32.partialorder %v104, 0.0004427343
  %v106 = vsel %vm105, %v103, %v100
  %v107 = vadd.f32 %v97, 1.0
  %v108 = vlog2.pop %v107
  %v109 = vmul.f32 %v108, 0.6931472
  %v110 = vmul.f32 -0.5, %v97
  %v111 = vadd.f32 %v110, 1.0
  %v112 = vmul.f32 %v111, %v97
  %v113 = vand.u32 2147483647, %v97
  %vm114 = vcmp.lt.f32.partialorder %v113, 0.0004427343
  %v115 = vsel %vm114, %v112, %v109
  %v116 = vadd.f32 %v88, %v106
  %v117 = vadd.f32 %v89, %v115
  %v118 = vld [vmem:[%s2] sm:$0xff]
  %v119 = vadd.f32 %v116, %v117
  %v120 = vadd.f32 %v118, %v119
  %121 = vst [vmem:[%s2] sm:$0xff] %v120
  // Predicated region
  $region14: #{nll_loss.1} parent=0 // pred_check
    _
  $region15: #{nll_loss.1} parent=0 // pred_check_branch
    %123 = sbr.rel (0) target = $region17
  $region16: #{nll_loss.1} parent=0 // pred_region
    _
  $region17: #{nll_loss.1} parent=0 // pred_fallthru
    _
  // Predicated region
  $region18: #{nll_loss.1} parent=0 // pred_check
    _
  $region19: #{nll_loss.1} parent=0 // pred_check_branch
    %125 = sbr.rel (0) target = $region21
  $region20: #{nll_loss.1} parent=0 // pred_region
    _
  $region21: #{nll_loss.1} parent=0 // pred_fallthru
    _

</llo_original>
